<compile_context>
chip_gen: v6e
topology: v6e:2x2x1
jax: 0.10.0
libtpu: 0.0.40
codegen_flags: <defaults>
</compile_context>

<pallas_src>
from functools import partial

import jax
import jax.numpy as jnp
from jax.experimental import pallas as pl
from jax.experimental.pallas import tpu as pltpu

_GRID_THRESHOLD = 1024           # batches <= this take the single-block path
_MAX_TILE_ROWS = 256 * 1024      # absolute cap on the streamed batch tile
_VMEM_BUDGET_BYTES = 16 << 20    # budget used when sizing the batch tile


def _mlp_kernel(xT_ref, w1T_ref, b1_ref, w2_ref, b2_ref, yT_ref, *, n_output):
    """Transposed (batch-in-lanes) MLP tile.

    xT_ref : (n_feature, TB)   f32   (batch on lanes)
    w1T_ref: (n_hidden, n_feature)
    b1_ref : (n_hidden, 1)
    w2_ref : (n_hidden, n_output)
    b2_ref : (n_output, 1)
    yT_ref : (n_output, TB)
    """
    xT = xT_ref[...]                       # (F, TB)
    w1T = w1T_ref[...]                     # (H, F)
    n_hidden, n_feature = w1T.shape

    # ---- layer 1: h^T = W1^T . x^T  -------------------------------------
    if n_feature <= 8:
        # Tiny contraction: unrolled VPU multiply-adds at full lane occupancy.
        # (H,1) broadcasts across lanes, (1,TB) broadcasts across sublanes.
        h = w1T[:, 0:1] * xT[0:1, :]
        for k in range(1, n_feature):
            h = h + w1T[:, k:k + 1] * xT[k:k + 1, :]
    else:
        # Wide-feature fallback: let the MXU do it.
        h = jnp.dot(w1T, xT, preferred_element_type=jnp.float32)

    # bias (H,1) broadcast across lanes + ReLU, all on the VPU.
    h = jnp.maximum(h + b1_ref[...], 0.0)          # (H, TB)

    # ---- layer 2: y^T = W2^T . h^T + b2 ----------------------------------
    if n_output == 1:
        # Sublane (XLU) reduction over the n_hidden rows -> lane-dense (1, TB).
        y = jnp.sum(h * w2_ref[...], axis=0, keepdims=True)
    else:
        y = jnp.einsum("hb,ho->ob", h, w2_ref[...],
                       preferred_element_type=jnp.float32)
    y = y + b2_ref[...]                            # (O, TB)

    yT_ref[...] = y.astype(yT_ref.dtype)


def _pick_batch_tile(B, n_feature, n_hidden, n_output,
                     vmem_budget_bytes=_VMEM_BUDGET_BYTES):
    """Batch-tile (lane) size for the streamed path.

    f32 bytes resident per batch column: double-buffered x / y tiles plus
    ~4 live (n_hidden, TB) intermediates during the MAC / ReLU / reduce chain.
    """
    per_col = 4 * (2 * n_feature + 2 * n_output + 4 * n_hidden)
    tb = vmem_budget_bytes // per_col
    tb = min(tb, _MAX_TILE_ROWS)
    # v7x megacore: keep the grid at >= 2 steps so both TensorCores get work.
    tb = min(tb, -(-B // 2))
    # Lane axis must be a multiple of 128 (ragged last tile is handled by
    # Pallas padding / OOB-write discard).
    tb = max(128, ((tb + 127) // 128) * 128)
    return int(tb)


def net_forward(x, w1, b1, w2, b2, *, grid_threshold=_GRID_THRESHOLD):
    """Forward pass of Net: y = relu(x @ w1 + b1) @ w2 + b2.

    x : (B, n_feature) f32
    w1: (n_feature, n_hidden);  b1: (n_hidden,), (1, n_hidden) or (n_hidden, 1)
    w2: (n_hidden, n_output);   b2: (n_output,), (1, n_output) or (n_output, 1)
    returns (B, n_output) f32
    """
    B, n_feature = x.shape
    n_hidden, n_output = w2.shape

    # Batch-in-lanes layout: transpose x once outside the kernel (layout
    # plumbing); weights are tiny so their transposes are negligible.
    xT = jnp.asarray(x, jnp.float32).T                     # (F, B)
    w1T = jnp.asarray(w1, jnp.float32).T                   # (H, F)
    w2c = jnp.asarray(w2, jnp.float32)                     # (H, O)
    b1c = jnp.asarray(b1, jnp.float32).reshape(n_hidden, 1)
    b2c = jnp.asarray(b2, jnp.float32).reshape(n_output, 1)

    kernel = partial(_mlp_kernel, n_output=n_output)
    out_shape = jax.ShapeDtypeStruct((n_output, B), jnp.float32)

    if B <= grid_threshold:
        # Single invocation, no grid: whole-array VMEM blocks, zero per-step
        # pipeline setup.  Output (1, B) is already lane-major.
        vmem = pl.BlockSpec(memory_space=pltpu.MemorySpace.VMEM)
        yT = pl.pallas_call(
            kernel,
            out_shape=out_shape,
            in_specs=[vmem, vmem, vmem, vmem, vmem],
            out_specs=vmem,
        )(xT, w1T, b1c, w2c, b2c)
    else:
        # Streamed path: large lane-axis batch tiles, weights resident every
        # step, batch axis "parallel" (sharded across v7x's 2 TensorCores).
        # The ragged last tile is safe: there are no cross-column reductions,
        # so padded input columns only produce discarded OOB output columns.
        tb = _pick_batch_tile(B, n_feature, n_hidden, n_output)
        yT = pl.pallas_call(
            kernel,
            out_shape=out_shape,
            grid=(pl.cdiv(B, tb),),
            in_specs=[
                # x^T tile: ~0.5 MiB per step.  If DMA ever shows up exposed
                # in a trace, add pipeline_mode=pl.Buffered(3) here.
                pl.BlockSpec((n_feature, tb), lambda i: (0, i)),
                pl.BlockSpec((n_hidden, n_feature), lambda i: (0, 0)),
                pl.BlockSpec((n_hidden, 1), lambda i: (0, 0)),
                pl.BlockSpec((n_hidden, n_output), lambda i: (0, 0)),
                pl.BlockSpec((n_output, 1), lambda i: (0, 0)),
            ],
            out_specs=pl.BlockSpec((n_output, tb), lambda i: (0, i)),
            compiler_params=pltpu.CompilerParams(
                dimension_semantics=("parallel",),
                vmem_limit_bytes=32 * 1024 * 1024,
            ),
        )(xT, w1T, b1c, w2c, b2c)

    if n_output == 1:
        # (1, B) -> (B, 1) is a pure reshape (same flat order), no transpose.
        return yT.reshape(B, 1)
    return yT.T


if __name__ == "__main__":
    # Shapes implied by the training script: n_feature=4, n_output=1.
    batch, n_feature, n_hidden, n_output = 8, 4, 32, 1

    key = jax.random.PRNGKey(0)
    kx, kw1, kb1, kw2, kb2, kx2 = jax.random.split(key, 6)

    # Deterministic parameter init (uniform, like torch.nn.Linear's scheme).
    bound1 = 1.0 / (n_feature ** 0.5)
    bound2 = 1.0 / (n_hidden ** 0.5)
    x = jax.random.normal(kx, (batch, n_feature), dtype=jnp.float32)
    w1 = jax.random.uniform(kw1, (n_feature, n_hidden), jnp.float32, -bound1, bound1)
    b1 = jax.random.uniform(kb1, (n_hidden,), jnp.float32, -bound1, bound1)
    w2 = jax.random.uniform(kw2, (n_hidden, n_output), jnp.float32, -bound2, bound2)
    b2 = jax.random.uniform(kb2, (n_output,), jnp.float32, -bound2, bound2)

    def ref_fn(xv):
        return jnp.maximum(xv @ w1 + b1.reshape(1, -1), 0.0) @ w2 + b2.reshape(1, -1)

    # Small batch -> no-grid single-block path.
    y = net_forward(x, w1, b1, w2, b2)
    jax.block_until_ready(y)
    assert y.shape == (batch, n_output)
    assert jnp.allclose(y, ref_fn(x), atol=1e-5, rtol=1e-5)

    # Larger batch -> streamed grid path (2 steps, ragged last tile).
    big_batch = 5000
    x_big = jax.random.normal(kx2, (big_batch, n_feature), dtype=jnp.float32)
    y_big = net_forward(x_big, w1, b1, w2, b2)
    jax.block_until_ready(y_big)
    assert y_big.shape == (big_batch, n_output)
    assert jnp.allclose(y_big, ref_fn(x_big), atol=1e-5, rtol=1e-5)

    print("KERNEL_OK")
</pallas_src>

<mosaic_0001>
module attributes {stable_mosaic.version = 11 : i64} {
  func.func @_mlp_kernel(%arg0: memref<4x8xf32, #tpu.memory_space<vmem>>, %arg1: memref<32x4xf32, #tpu.memory_space<vmem>>, %arg2: memref<32x1xf32, #tpu.memory_space<vmem>>, %arg3: memref<32x1xf32, #tpu.memory_space<vmem>>, %arg4: memref<1x1xf32, #tpu.memory_space<vmem>>, %arg5: memref<1x8xf32, #tpu.memory_space<vmem>>) attributes {dimension_semantics = [], scalar_prefetch = 0 : i64, scratch_operands = 0 : i64, tpu.core_type = #tpu.core_type<tc>} {
    %c0 = arith.constant 0 : index
    %c0_0 = arith.constant 0 : index
    %0 = vector.load %arg0[%c0, %c0_0] : memref<4x8xf32, #tpu.memory_space<vmem>>, vector<4x8xf32>
    %c0_1 = arith.constant 0 : index
    %c0_2 = arith.constant 0 : index
    %1 = vector.load %arg1[%c0_1, %c0_2] : memref<32x4xf32, #tpu.memory_space<vmem>>, vector<32x4xf32>
    %2 = vector.extract_strided_slice %1 {offsets = [0, 0], sizes = [32, 1], strides = [1, 1]} : vector<32x4xf32> to vector<32x1xf32>
    %3 = vector.extract_strided_slice %0 {offsets = [0, 0], sizes = [1, 8], strides = [1, 1]} : vector<4x8xf32> to vector<1x8xf32>
    %4 = vector.broadcast %2 : vector<32x1xf32> to vector<32x8xf32>
    %5 = vector.broadcast %3 : vector<1x8xf32> to vector<32x8xf32>
    %6 = arith.mulf %4, %5 : vector<32x8xf32>
    %7 = vector.extract_strided_slice %1 {offsets = [0, 1], sizes = [32, 1], strides = [1, 1]} : vector<32x4xf32> to vector<32x1xf32>
    %8 = vector.extract_strided_slice %0 {offsets = [1, 0], sizes = [1, 8], strides = [1, 1]} : vector<4x8xf32> to vector<1x8xf32>
    %9 = vector.broadcast %7 : vector<32x1xf32> to vector<32x8xf32>
    %10 = vector.broadcast %8 : vector<1x8xf32> to vector<32x8xf32>
    %11 = arith.mulf %9, %10 : vector<32x8xf32>
    %12 = arith.addf %6, %11 : vector<32x8xf32>
    %13 = vector.extract_strided_slice %1 {offsets = [0, 2], sizes = [32, 1], strides = [1, 1]} : vector<32x4xf32> to vector<32x1xf32>
    %14 = vector.extract_strided_slice %0 {offsets = [2, 0], sizes = [1, 8], strides = [1, 1]} : vector<4x8xf32> to vector<1x8xf32>
    %15 = vector.broadcast %13 : vector<32x1xf32> to vector<32x8xf32>
    %16 = vector.broadcast %14 : vector<1x8xf32> to vector<32x8xf32>
    %17 = arith.mulf %15, %16 : vector<32x8xf32>
    %18 = arith.addf %12, %17 : vector<32x8xf32>
    %19 = vector.extract_strided_slice %1 {offsets = [0, 3], sizes = [32, 1], strides = [1, 1]} : vector<32x4xf32> to vector<32x1xf32>
    %20 = vector.extract_strided_slice %0 {offsets = [3, 0], sizes = [1, 8], strides = [1, 1]} : vector<4x8xf32> to vector<1x8xf32>
    %21 = vector.broadcast %19 : vector<32x1xf32> to vector<32x8xf32>
    %22 = vector.broadcast %20 : vector<1x8xf32> to vector<32x8xf32>
    %23 = arith.mulf %21, %22 : vector<32x8xf32>
    %24 = arith.addf %18, %23 : vector<32x8xf32>
    %c0_3 = arith.constant 0 : index
    %c0_4 = arith.constant 0 : index
    %25 = vector.load %arg2[%c0_3, %c0_4] : memref<32x1xf32, #tpu.memory_space<vmem>>, vector<32x1xf32>
    %26 = vector.broadcast %25 : vector<32x1xf32> to vector<32x8xf32>
    %27 = arith.addf %24, %26 : vector<32x8xf32>
    %cst = arith.constant 0.000000e+00 : f32
    %28 = vector.broadcast %cst : f32 to vector<32x8xf32>
    %29 = arith.maximumf %27, %28 : vector<32x8xf32>
    %c0_5 = arith.constant 0 : index
    %c0_6 = arith.constant 0 : index
    %30 = vector.load %arg3[%c0_5, %c0_6] : memref<32x1xf32, #tpu.memory_space<vmem>>, vector<32x1xf32>
    %31 = vector.broadcast %30 : vector<32x1xf32> to vector<32x8xf32>
    %32 = arith.mulf %29, %31 : vector<32x8xf32>
    %cst_7 = arith.constant dense<0.000000e+00> : vector<8xf32>
    %33 = vector.multi_reduction <add>, %32, %cst_7 [0] : vector<32x8xf32> to vector<8xf32>
    %34 = vector.shape_cast %33 : vector<8xf32> to vector<1x8xf32>
    %c0_8 = arith.constant 0 : index
    %c0_9 = arith.constant 0 : index
    %35 = vector.load %arg4[%c0_8, %c0_9] : memref<1x1xf32, #tpu.memory_space<vmem>>, vector<1x1xf32>
    %36 = vector.broadcast %35 : vector<1x1xf32> to vector<1x8xf32>
    %37 = arith.addf %34, %36 : vector<1x8xf32>
    %c0_10 = arith.constant 0 : index
    %c0_11 = arith.constant 0 : index
    %38 = vector.load %arg5[%c0_10, %c0_11] : memref<1x8xf32, #tpu.memory_space<vmem>>, vector<1x8xf32>
    tpu.vector_store %arg5[%c0_10, %c0_11], %37 {strides = array<i32>} : memref<1x8xf32, #tpu.memory_space<vmem>>, vector<1x8xf32>,
    return
  }
}

</mosaic_0001>

<llo_original>
// kernel: tpu_custom_call.1
$region0: #{tpu_custom_call.1}
  #allocation0 [shape = 'u32[]', space=smem, size = 0x4, offset = 0x4, fixed_abs, tag = 'smem constant byte address 0x4 - core index']
  #allocation1 [shape = 'u32[144,128]{1,0:T(1,128)}', space=vmem, size = 0x12000, scoped, tag = 'internal scratch']
  #allocation2 [shape = 'f32[1,1]{1,0:T(1,128)S(1)}', space=vmem, size = 0x200, scoped, tag = 'scoped memory for tpu_custom_call.1']
  %s0 = inlined_call_operand.vmem [shape: f32[4,8], index: 0, kind: input, shape index: {}]
  %s1 = inlined_call_operand.vmem [shape: f32[32,4], index: 1, kind: input, shape index: {}]
  %s2 = inlined_call_operand.vmem [shape: f32[32,1], index: 2, kind: input, shape index: {}]
  %s3 = inlined_call_operand.vmem [shape: f32[32,1], index: 3, kind: input, shape index: {}]
  %s4 = inlined_call_operand.<no memory space> [shape: f32[1,1], index: 4, kind: input, shape index: {}]
  %s5 = inlined_call_operand.hbm [shape: f32[1,8], index: 5, kind: output, shape index: {}]
  %s6 = sld [smem:[#allocation0]]
  $region30: #{tpu_custom_call.1} parent=0
    _
  %s8 = ssub.s32 1, %s6
  %s9 = scalar_select 0, %s8, %s6
  %v10 = vstv %s4
  %11 = vst [vmem:[#allocation2] sm:$0x1] %v10
  $region1: #{tpu_custom_call.1} parent=0
    #allocation3 [shape = 'u8[512]{0}', space=vmem, size = 0x400, scoped, tag = 'output window, operand 0, single buffered']
    #allocation4 [shape = 's32[1]{0}', space=sflag, size = 0x4, scoped, tag = 'scoped memory for tpu_custom_call.1']
    %12 = vsyncpa [#allocation4], 0
    // Predicated region
    $region2: #{tpu_custom_call.1} parent=1 // pred_check
      _
    $region3: #{tpu_custom_call.1} parent=1 // pred_check_branch
      %14 = sbr.rel (0) target = $region5
    $region4: #{tpu_custom_call.1} parent=1 // pred_region
      _
    $region5: #{tpu_custom_call.1} parent=1 // pred_fallthru
      _
    // Predicated region
    $region6: #{tpu_custom_call.1} parent=1 // pred_check
      _
    $region7: #{tpu_custom_call.1} parent=1 // pred_check_branch
      %16 = sbr.rel (0) target = $region9
    $region8: #{tpu_custom_call.1} parent=1 // pred_region
      _
    $region9: #{tpu_custom_call.1} parent=1 // pred_fallthru
      _
    // Predicated region
    $region10: #{tpu_custom_call.1} parent=1 // pred_check
      _
    $region11: #{tpu_custom_call.1} parent=1 // pred_check_branch
      %18 = sbr.rel (0) target = $region13
    $region12: #{tpu_custom_call.1} parent=1 // pred_region
      _
    $region13: #{tpu_custom_call.1} parent=1 // pred_fallthru
      _
    // Predicated region
    $region14: #{tpu_custom_call.1} parent=1 // pred_check
      _
    $region15: #{tpu_custom_call.1} parent=1 // pred_check_branch
      %20 = sbr.rel (0) target = $region17
    $region16: #{tpu_custom_call.1} parent=1 // pred_region
      _
    $region17: #{tpu_custom_call.1} parent=1 // pred_fallthru
      _
    // Predicated region
    $region18: #{tpu_custom_call.1} parent=1 // pred_check
      _
    $region19: #{tpu_custom_call.1} parent=1 // pred_check_branch
      %22 = sbr.rel (0) target = $region21
    $region20: #{tpu_custom_call.1} parent=1 // pred_region
      _
    $region21: #{tpu_custom_call.1} parent=1 // pred_fallthru
      _
    %v23 = vld [vmem:[%s0] sm:$0xf]
    %v24 = vld [vmem:[%s1] sm:$0xff]
    %v25 = vld [vmem:[%s1 + $0x8] sm:$0xff]
    %v26 = vld [vmem:[%s1 + $0x10] sm:$0xff]
    %v27 = vld [vmem:[%s1 + $0x18] sm:$0xff]
    %29 = vset.pattern.permute.xlu0 0
    %30 = vperm.xlu0 %29, %v24
    %v31 = vpop.permute.xlu0 %30
    %34 = vset.pattern.permute.xlu0 0
    %35 = vperm.xlu0 %34, %v25
    %v36 = vpop.permute.xlu0 %35
    %39 = vset.pattern.permute.xlu0 0
    %40 = vperm.xlu0 %39, %v26
    %v41 = vpop.permute.xlu0 %40
    %44 = vset.pattern.permute.xlu0 0
    %45 = vperm.xlu0 %44, %v27
    %v46 = vpop.permute.xlu0 %45
    %v48 = vlaneseq
    %v49 = vshrl.u32 %v48, 7
    %v50 = vsub.s32 0, %v49
    %v51 = vrot.slane %v23, %v50
    %v52 = vmul.f32 %v31, %v51
    %v53 = vmul.f32 %v36, %v51
    %v54 = vmul.f32 %v41, %v51
    %v55 = vmul.f32 %v46, %v51
    %56 = vset.pattern.permute.xlu0 1
    %57 = vperm.xlu0 %56, %v24
    %v58 = vpop.permute.xlu0 %57
    %60 = vset.pattern.permute.xlu0 1
    %61 = vperm.xlu0 %60, %v25
    %v62 = vpop.permute.xlu0 %61
    %64 = vset.pattern.permute.xlu0 1
    %65 = vperm.xlu0 %64, %v26
    %v66 = vpop.permute.xlu0 %65
    %68 = vset.pattern.permute.xlu0 1
    %69 = vperm.xlu0 %68, %v27
    %v70 = vpop.permute.xlu0 %69
    %v72 = vlaneseq
    %v73 = vshrl.u32 %v72, 7
    %v74 = vsub.s32 1, %v73
    %v75 = vrot.slane %v23, %v74
    %v76 = vmul.f32 %v58, %v75
    %v77 = vmul.f32 %v62, %v75
    %v78 = vmul.f32 %v66, %v75
    %v79 = vmul.f32 %v70, %v75
    %v80 = vadd.f32 %v52, %v76
    %v81 = vadd.f32 %v53, %v77
    %v82 = vadd.f32 %v54, %v78
    %v83 = vadd.f32 %v55, %v79
    %84 = vset.pattern.permute.xlu0 2
    %85 = vperm.xlu0 %84, %v24
    %v86 = vpop.permute.xlu0 %85
    %88 = vset.pattern.permute.xlu0 2
    %89 = vperm.xlu0 %88, %v25
    %v90 = vpop.permute.xlu0 %89
    %92 = vset.pattern.permute.xlu0 2
    %93 = vperm.xlu0 %92, %v26
    %v94 = vpop.permute.xlu0 %93
    %96 = vset.pattern.permute.xlu0 2
    %97 = vperm.xlu0 %96, %v27
    %v98 = vpop.permute.xlu0 %97
    %v100 = vlaneseq
    %v101 = vshrl.u32 %v100, 7
    %v102 = vsub.s32 2, %v101
    %v103 = vrot.slane %v23, %v102
    %v104 = vmul.f32 %v86, %v103
    %v105 = vmul.f32 %v90, %v103
    %v106 = vmul.f32 %v94, %v103
    %v107 = vmul.f32 %v98, %v103
    %v108 = vadd.f32 %v80, %v104
    %v109 = vadd.f32 %v81, %v105
    %v110 = vadd.f32 %v82, %v106
    %v111 = vadd.f32 %v83, %v107
    %112 = vset.pattern.permute.xlu0 3
    %113 = vperm.xlu0 %112, %v24
    %v114 = vpop.permute.xlu0 %113
    %116 = vset.pattern.permute.xlu0 3
    %117 = vperm.xlu0 %116, %v25
    %v118 = vpop.permute.xlu0 %117
    %120 = vset.pattern.permute.xlu0 3
    %121 = vperm.xlu0 %120, %v26
    %v122 = vpop.permute.xlu0 %121
    %124 = vset.pattern.permute.xlu0 3
    %125 = vperm.xlu0 %124, %v27
    %v126 = vpop.permute.xlu0 %125
    %v128 = vlaneseq
    %v129 = vshrl.u32 %v128, 7
    %v130 = vsub.s32 3, %v129
    %v131 = vrot.slane %v23, %v130
    %v132 = vmul.f32 %v114, %v131
    %v133 = vmul.f32 %v118, %v131
    %v134 = vmul.f32 %v122, %v131
    %v135 = vmul.f32 %v126, %v131
    %v136 = vadd.f32 %v108, %v132
    %v137 = vadd.f32 %v109, %v133
    %v138 = vadd.f32 %v110, %v134
    %v139 = vadd.f32 %v111, %v135
    %v140 = vld [vmem:[%s2] sm:$0xff]
    %v141 = vld [vmem:[%s2 + $0x8] sm:$0xff]
    %v142 = vld [vmem:[%s2 + $0x10] sm:$0xff]
    %v143 = vld [vmem:[%s2 + $0x18] sm:$0xff]
    %145 = vset.pattern.permute.xlu0 0
    %146 = vperm.xlu0 %145, %v140
    %v147 = vpop.permute.xlu0 %146
    %150 = vset.pattern.permute.xlu0 0
    %151 = vperm.xlu0 %150, %v141
    %v152 = vpop.permute.xlu0 %151
    %155 = vset.pattern.permute.xlu0 0
    %156 = vperm.xlu0 %155, %v142
    %v157 = vpop.permute.xlu0 %156
    %160 = vset.pattern.permute.xlu0 0
    %161 = vperm.xlu0 %160, %v143
    %v162 = vpop.permute.xlu0 %161
    %v164 = vadd.f32 %v136, %v147
    %v165 = vadd.f32 %v137, %v152
    %v166 = vadd.f32 %v138, %v157
    %v167 = vadd.f32 %v139, %v162
    %v168 = vmax.f32 %v164, 0.0
    %v169 = vmax.f32 %v165, 0.0
    %v170 = vmax.f32 %v166, 0.0
    %v171 = vmax.f32 %v167, 0.0
    %v172 = vld [vmem:[%s3] sm:$0xff]
    %v173 = vld [vmem:[%s3 + $0x8] sm:$0xff]
    %v174 = vld [vmem:[%s3 + $0x10] sm:$0xff]
    %v175 = vld [vmem:[%s3 + $0x18] sm:$0xff]
    %177 = vset.pattern.permute.xlu0 0
    %178 = vperm.xlu0 %177, %v172
    %v179 = vpop.permute.xlu0 %178
    %182 = vset.pattern.permute.xlu0 0
    %183 = vperm.xlu0 %182, %v173
    %v184 = vpop.permute.xlu0 %183
    %187 = vset.pattern.permute.xlu0 0
    %188 = vperm.xlu0 %187, %v174
    %v189 = vpop.permute.xlu0 %188
    %192 = vset.pattern.permute.xlu0 0
    %193 = vperm.xlu0 %192, %v175
    %v194 = vpop.permute.xlu0 %193
    %v196 = vmul.f32 %v168, %v179
    %v197 = vmul.f32 %v169, %v184
    %v198 = vmul.f32 %v170, %v189
    %v199 = vmul.f32 %v171, %v194
    %vm200 = vcmask 64512
    %v201 = vsel %vm200, %v196, 0.0
    %v202 = vsel %vm200, %v197, 0.0
    %v203 = vadd.f32 %v201, %v202
    %v204 = vsel %vm200, %v198, 0.0
    %v205 = vadd.f32 %v203, %v204
    %v206 = vsel %vm200, %v199, 0.0
    %v207 = vadd.f32 %v205, %v206
    %v208 = vrot.slane %v207, 4
    %v209 = vadd.f32 %v207, %v208
    %v210 = vrot.slane %v209, 2
    %v211 = vadd.f32 %v209, %v210
    %v212 = vrot.slane %v211, 1
    %v213 = vadd.f32 %v211, %v212
    %v214 = vld [vmem:[#allocation2] sm:$0x1]
    %216 = vset.pattern.permute.xlu0 0
    %217 = vperm.xlu0 %216, %v214
    %v218 = vpop.permute.xlu0 %217
    %v220 = vlaneseq
    %v221 = vshrl.u32 %v220, 7
    %v222 = vsub.s32 0, %v221
    %v223 = vrot.slane %v218, %v222
    %v224 = vadd.f32 %v213, %v223
    %vm225 = vcmask 57344
    %226 = vst.msk [vmem:[#allocation3] sm:$0x1] %vm225, %v224
    // Predicated region
    $region22: #{tpu_custom_call.1} parent=1 // pred_check
      _
    $region23: #{tpu_custom_call.1} parent=1 // pred_check_branch
      %228 = sbr.rel (0) target = $region25
    $region24: #{tpu_custom_call.1} parent=1 // pred_region
      %s230 = ssub.s32 16, 16
      %231 = vsyncadd [#allocation4], %s230
      %s233 = sshll.u32 [#allocation3], 4
      %s234 = int_to_ptr.vmem [resolvable:$true] %s233
      %236 = dma.vmem_to_hbm [thread:$0]  %s234, 16, %s5, [#allocation4]
    $region25: #{tpu_custom_call.1} parent=1 // pred_fallthru
      _
    // Predicated region
    $region26: #{tpu_custom_call.1} parent=1 // pred_check
      _
    $region27: #{tpu_custom_call.1} parent=1 // pred_check_branch
      %238 = sbr.rel (0) target = $region29
    $region28: #{tpu_custom_call.1} parent=1 // pred_region
      %239 = dma.done [#allocation4], 16
    $region29: #{tpu_custom_call.1} parent=1 // pred_fallthru
      _
    %240 = vsyncpa [#allocation4], 1

</llo_original>
